<compile_context>
chip_gen: v7x
topology: tpu7x:2x2x1
jax: 0.10.0
libtpu: 0.0.40
codegen_flags: <defaults>
</compile_context>

<pallas_src>
import math
from functools import partial

import jax
import jax.numpy as jnp
from jax.experimental import pallas as pl
from jax.experimental.pallas import tpu as pltpu


def _make_kernel(layers):
    """Fused downsample-stack + channel-concat kernel body (one batch per grid step).

    layers: static tuple of (stride, pad, c_in, c_out, l_in, l_out) per Conv1d.

    Refs (in order):
      ctx_ref : (l_in0, c_in0)      raw context, length-major (padding absorbed in-kernel)
      x_ref   : (c_x, l_x)          tensor concatenated after the stack (NCL)
      per layer i: w_ref bf16  -- (2*s*c_in, c_out) for intermediate, (c_out, 2*s*c_in) last
                   b_ref f32   -- (1, c_out) intermediate, (c_out, 1) last
      out_ref : (c_out_last + c_x, l_x)  NCL, channels = [conv stack | x]
      act[i]  : VMEM f32 (l_in_i + 2*pad_i, c_in_i)  padded, length-major input of layer i
    """
    n = len(layers)

    def kernel(*refs):
        ctx_ref, x_ref = refs[0], refs[1]
        wb = refs[2:2 + 2 * n]
        out_ref = refs[2 + 2 * n]
        act = refs[3 + 2 * n:]

        # Ingest context into layer-0's padded buffer (absorbs the XLA jnp.pad);
        # only the pad rows are zeroed, the interior is overwritten with data.
        s0, p0, c0, _, l0, _ = layers[0]
        act0 = act[0]
        act0[0:p0, :] = jnp.zeros((p0, c0), act0.dtype)
        act0[p0 + l0:, :] = jnp.zeros((act0.shape[0] - p0 - l0, c0), act0.dtype)
        act0[p0:p0 + l0, :] = ctx_ref[...].astype(act0.dtype)

        for i, (s, p, c_in, c_out, l_in, l_out) in enumerate(layers):
            w_ref, b_ref = wb[2 * i], wb[2 * i + 1]
            src = act[i]
            # im2col folded into the contraction dim: 2s strided sublane reads
            # (stride = s, static starts, no integer indexers) lane-concatenated
            # into ONE (l_out, 2s*c_in) operand -> one MXU matmul per layer/step.
            taps = [src[pl.ds(k, l_out, stride=s), :] for k in range(2 * s)]
            u = jnp.concatenate(taps, axis=1).astype(jnp.bfloat16)

            if i == n - 1:
                # channel-major (NT) matmul -> NCL output rows with no transpose
                y = jax.lax.dot_general(
                    w_ref[...], u,                               # (c_out,K) x (l_out,K)
                    dimension_numbers=(((1,), (1,)), ((), ())),
                    preferred_element_type=jnp.float32)          # (c_out, l_out)
                y = y + b_ref[...]                               # (c_out, 1) bias, f32
                out_ref[0:c_out, :] = y.astype(out_ref.dtype)
            else:
                y = jnp.dot(u, w_ref[...],                       # (l_out,K) @ (K,c_out)
                            preferred_element_type=jnp.float32)
                y = y + b_ref[...]                               # (1, c_out) bias, f32
                dst = act[i + 1]
                p_next = layers[i + 1][1]
                # zero ONLY the padding rows of the next layer's buffer
                dst[0:p_next, :] = jnp.zeros((p_next, c_out), dst.dtype)
                dst[p_next + l_out:, :] = jnp.zeros(
                    (dst.shape[0] - p_next - l_out, c_out), dst.dtype)
                dst[p_next:p_next + l_out, :] = y.astype(dst.dtype)

        # fused torch.cat([context, x], dim=1): x fills the trailing channels.
        c_last = layers[-1][3]
        out_ref[c_last:, :] = x_ref[...].astype(out_ref.dtype)
        # TODO(synk): EmbeddingCFG token drop (cfg_prob > 0) and x_mask handling are
        # identities at the module defaults and are not implemented here.

    return kernel


def _const_index_map(ndim):
    return lambda b: (0,) * ndim


@partial(jax.jit, static_argnums=(0,))
def _concat_model_forward(stride_pad, params, context, x):
    """stride_pad: static ((stride, pad), ...); params: ((w_fold_bf16, bias_f32), ...)."""
    B, c0, l0 = context.shape
    c_x, l_x = x.shape[1], x.shape[2]

    if len(stride_pad) == 0:
        # degenerate config (no downsample layers): plain channel concat
        return jnp.concatenate([context, x], axis=1)

    # static per-layer geometry (matches nn.Conv1d output-length formula)
    layers = []
    c_in, l_in = c0, l0
    for (s, pad) in stride_pad:
        l_out = (l_in + 2 * pad - 2 * s) // s + 1
        c_out = 2 * c_in
        layers.append((s, pad, c_in, c_out, l_in, l_out))
        c_in, l_in = c_out, l_out
    layers = tuple(layers)
    assert l_in == l_x, (l_in, l_x)          # mirrors the torch assert

    # Only remaining XLA glue: NCL -> length-major NLC transpose of the raw context.
    # (zero-padding is absorbed into the kernel's VMEM buffer)
    ctx_lm = jnp.transpose(context, (0, 2, 1))

    flat_params = [a for wb in params for a in wb]
    out_channels = layers[-1][3] + c_x

    in_specs = [
        pl.BlockSpec((None, l0, c0), lambda b: (b, 0, 0)),
        pl.BlockSpec((None, c_x, l_x), lambda b: (b, 0, 0)),
    ]
    for a in flat_params:
        in_specs.append(pl.BlockSpec(a.shape, _const_index_map(a.ndim)))

    out_spec = pl.BlockSpec((None, out_channels, l_x), lambda b: (b, 0, 0))

    scratch_dims = [(layers[i][4] + 2 * layers[i][1], layers[i][2])
                    for i in range(len(layers))]
    scratch_shapes = [pltpu.VMEM(sd, jnp.float32) for sd in scratch_dims]

    # VMEM budget: double-buffered blocks + params + scratch, with slack.
    def nbytes(shape, itemsize):
        return math.prod(shape) * itemsize

    vmem = 2 * nbytes((l0, c0), context.dtype.itemsize)
    vmem += 2 * nbytes((c_x, l_x), x.dtype.itemsize)
    vmem += 2 * nbytes((out_channels, l_x), x.dtype.itemsize)
    vmem += sum(2 * nbytes(a.shape, a.dtype.itemsize) for a in flat_params)
    vmem += sum(nbytes(sd, 4) for sd in scratch_dims)
    vmem_limit = int(min(128 * 1024 * 1024, max(4 * 1024 * 1024, 2 * vmem + (1 << 20))))

    return pl.pallas_call(
        _make_kernel(layers),
        out_shape=jax.ShapeDtypeStruct((B, out_channels, l_x), x.dtype),
        grid=(B,),
        in_specs=in_specs,
        out_specs=out_spec,
        scratch_shapes=scratch_shapes,
        compiler_params=pltpu.CompilerParams(
            dimension_semantics=("parallel",),
            vmem_limit_bytes=vmem_limit),
    )(ctx_lm, x, *flat_params)


class ConcatModelPallas:
    """JAX/Pallas port of ConcatModel.forward (backbone treated as identity)."""

    def __init__(self, in_dim, stride, key):
        self.stride_pad = tuple((int(s), int(math.ceil(s / 2))) for s in stride)
        torch_layers = []       # raw nn.Conv1d-layout params (for the reference check)
        kernel_params = []      # folded / pre-cast params consumed by the kernel
        d = in_dim
        n = len(self.stride_pad)
        for i, (s, pad) in enumerate(self.stride_pad):
            k = 2 * s
            key, kw, kb = jax.random.split(key, 3)
            bound = 1.0 / math.sqrt(d * k)          # nn.Conv1d default init
            w = jax.random.uniform(kw, (2 * d, d, k), jnp.float32, -bound, bound)
            b = jax.random.uniform(kb, (2 * d,), jnp.float32, -bound, bound)
            torch_layers.append((w, b, s, pad))
            if i == n - 1:
                # (c_out, 2s*c_in): channel-major NT epilogue, bias (c_out, 1)
                w_fold = jnp.transpose(w, (0, 2, 1)).reshape(2 * d, k * d)
                b_k = b.reshape(2 * d, 1)
            else:
                # (2s*c_in, c_out): row index = tap*c_in + ci, bias (1, c_out)
                w_fold = jnp.transpose(w, (2, 1, 0)).reshape(k * d, 2 * d)
                b_k = b.reshape(1, 2 * d)
            kernel_params.append((w_fold.astype(jnp.bfloat16), b_k.astype(jnp.float32)))
            d *= 2
        self.torch_layers = torch_layers
        self.kernel_params = tuple(kernel_params)
        key, kc = jax.random.split(key)
        # EmbeddingCFG parameter (identity at cfg_prob == 0; kept for parity)
        self.cfg_embedding = jax.random.normal(kc, (d,), jnp.float32) / math.sqrt(d)
        self.out_dim = d

    def __call__(self, x, timesteps, context, x_mask=None, cfg=False, cfg_prob=0.0):
        # TODO(synk): backbone `self.model` is unspecified in the reference module
        # -> identity pass-through (timesteps therefore unused here).
        return _concat_model_forward(self.stride_pad, self.kernel_params, context, x)


def _conv1d_ref(x, w, b, stride, padding):
    """Pure-XLA nn.Conv1d reference (NCL) for the numerical sanity check."""
    y = jax.lax.conv_general_dilated(
        x, w, window_strides=(stride,), padding=[(padding, padding)],
        dimension_numbers=("NCH", "OIH", "NCH"),
        precision=jax.lax.Precision.HIGHEST)
    return y + b[None, :, None]


if __name__ == "__main__":
    key = jax.random.PRNGKey(0)
    key, kx, kc, kt = jax.random.split(key, 4)

    B = 2
    in_dim = 4          # context channels entering the downsample stack
    L_context = 32
    stride = [2, 2]     # lengths 32 -> 16 -> 8, channels 4 -> 8 -> 16
    x_channels = 4
    L_x = 8             # must equal final context length

    model = ConcatModelPallas(in_dim, stride, key)

    x = jax.random.normal(kx, (B, x_channels, L_x), jnp.float32)
    context = jax.random.normal(kc, (B, in_dim, L_context), jnp.float32)
    timesteps = jax.random.uniform(kt, (B,), jnp.float32)

    out = model(x, timesteps, context)
    out = jax.block_until_ready(out)

    expected_channels = model.out_dim + x_channels   # 16 + 4
    assert out.shape == (B, expected_channels, L_x), out.shape

    # numerical check against an XLA conv reference.  Tolerance is loose because the
    # kernel uses bf16 matmul operands (f32 accumulate) vs the HIGHEST-precision f32
    # reference conv.
    ref_ctx = context
    for (w, b, s, p) in model.torch_layers:
        ref_ctx = _conv1d_ref(ref_ctx, w, b, s, p)
    ref = jnp.concatenate([ref_ctx, x], axis=1)
    assert bool(jnp.allclose(out, ref, atol=5e-2, rtol=5e-2)), \
        float(jnp.max(jnp.abs(out - ref)))

    print("KERNEL_OK")
</pallas_src>

<mosaic_0001>
module attributes {stable_mosaic.version = 11 : i64} {
  func.func @kernel(%arg0: i32, %arg1: memref<1x32x4xf32, #tpu.memory_space<vmem>>, %arg2: memref<1x4x8xf32, #tpu.memory_space<vmem>>, %arg3: memref<16x8xbf16, #tpu.memory_space<vmem>>, %arg4: memref<1x8xf32, #tpu.memory_space<vmem>>, %arg5: memref<16x32xbf16, #tpu.memory_space<vmem>>, %arg6: memref<16x1xf32, #tpu.memory_space<vmem>>, %arg7: memref<1x20x8xf32, #tpu.memory_space<vmem>>, %arg8: memref<34x4xf32, #tpu.memory_space<vmem>>, %arg9: memref<18x8xf32, #tpu.memory_space<vmem>>) attributes {dimension_semantics = [#tpu.dimension_semantics<parallel>], iteration_bounds = array<i64: 2>, scalar_prefetch = 0 : i64, scratch_operands = 2 : i64, tpu.core_type = #tpu.core_type<tc>, window_params = [{transform_indices = @transform_0, window_bounds = array<i64: 1, 32, 4>}, {transform_indices = @transform_1, window_bounds = array<i64: 1, 4, 8>}, {pipeline_mode = #tpu.pipeline_mode<synchronous>, transform_indices = @transform_2, window_bounds = array<i64: 16, 8>}, {pipeline_mode = #tpu.pipeline_mode<synchronous>, transform_indices = @transform_3, window_bounds = array<i64: 1, 8>}, {pipeline_mode = #tpu.pipeline_mode<synchronous>, transform_indices = @transform_4, window_bounds = array<i64: 16, 32>}, {pipeline_mode = #tpu.pipeline_mode<synchronous>, transform_indices = @transform_5, window_bounds = array<i64: 16, 1>}, {transform_indices = @transform_6, window_bounds = array<i64: 1, 20, 8>}]} {
    %cst = arith.constant 0.000000e+00 : f32
    %0 = vector.broadcast %cst : f32 to vector<1x4xf32>
    %c0 = arith.constant 0 : index
    %c0_0 = arith.constant 0 : index
    %1 = vector.load %arg8[%c0, %c0_0] : memref<34x4xf32, #tpu.memory_space<vmem>>, vector<1x4xf32>
    tpu.vector_store %arg8[%c0, %c0_0], %0 {strides = array<i32>} : memref<34x4xf32, #tpu.memory_space<vmem>>, vector<1x4xf32>,
    %cst_1 = arith.constant 0.000000e+00 : f32
    %2 = vector.broadcast %cst_1 : f32 to vector<1x4xf32>
    %c33 = arith.constant 33 : index
    %c0_2 = arith.constant 0 : index
    %3 = vector.load %arg8[%c33, %c0_2] : memref<34x4xf32, #tpu.memory_space<vmem>>, vector<1x4xf32>
    tpu.vector_store %arg8[%c33, %c0_2], %2 {strides = array<i32>} : memref<34x4xf32, #tpu.memory_space<vmem>>, vector<1x4xf32>,
    %c0_3 = arith.constant 0 : index
    %c0_4 = arith.constant 0 : index
    %c0_5 = arith.constant 0 : index
    %4 = vector.load %arg1[%c0_3, %c0_4, %c0_5] : memref<1x32x4xf32, #tpu.memory_space<vmem>>, vector<1x32x4xf32>
    %5 = vector.shape_cast %4 : vector<1x32x4xf32> to vector<32x4xf32>
    %c1 = arith.constant 1 : index
    %c0_6 = arith.constant 0 : index
    %6 = vector.load %arg8[%c1, %c0_6] : memref<34x4xf32, #tpu.memory_space<vmem>>, vector<32x4xf32>
    tpu.vector_store %arg8[%c1, %c0_6], %5 {strides = array<i32>} : memref<34x4xf32, #tpu.memory_space<vmem>>, vector<32x4xf32>,
    %c0_7 = arith.constant 0 : index
    %c0_8 = arith.constant 0 : index
    %7 = tpu.strided_load %arg8[%c0_7, %c0_8] {strides = array<i32: 2, 1>} : memref<34x4xf32, #tpu.memory_space<vmem>>, vector<16x4xf32>
    %c1_9 = arith.constant 1 : index
    %c0_10 = arith.constant 0 : index
    %8 = tpu.strided_load %arg8[%c1_9, %c0_10] {strides = array<i32: 2, 1>} : memref<34x4xf32, #tpu.memory_space<vmem>>, vector<16x4xf32>
    %c2 = arith.constant 2 : index
    %c0_11 = arith.constant 0 : index
    %9 = tpu.strided_load %arg8[%c2, %c0_11] {strides = array<i32: 2, 1>} : memref<34x4xf32, #tpu.memory_space<vmem>>, vector<16x4xf32>
    %c3 = arith.constant 3 : index
    %c0_12 = arith.constant 0 : index
    %10 = tpu.strided_load %arg8[%c3, %c0_12] {strides = array<i32: 2, 1>} : memref<34x4xf32, #tpu.memory_space<vmem>>, vector<16x4xf32>
    %11 = tpu.concatenate %7, %8, %9, %10 in 1 : vector<16x4xf32>, vector<16x4xf32>, vector<16x4xf32>, vector<16x4xf32> -> vector<16x16xf32>
    %12 = arith.truncf %11 : vector<16x16xf32> to vector<16x16xbf16>
    %c0_13 = arith.constant 0 : index
    %c0_14 = arith.constant 0 : index
    %13 = vector.load %arg3[%c0_13, %c0_14] : memref<16x8xbf16, #tpu.memory_space<vmem>>, vector<16x8xbf16>
    %cst_15 = arith.constant dense<0.000000e+00> : vector<16x8xf32>
    %14 = tpu.matmul %12, %13, %cst_15 {dimension_numbers = #tpu.dot_dimension_numbers<[1], [0], [0], [1], [0, 0, 1, 1], [], []>} : vector<16x16xbf16>, vector<16x8xbf16>, vector<16x8xf32> -> vector<16x8xf32>
    %c0_16 = arith.constant 0 : index
    %c0_17 = arith.constant 0 : index
    %15 = vector.load %arg4[%c0_16, %c0_17] : memref<1x8xf32, #tpu.memory_space<vmem>>, vector<1x8xf32>
    %16 = vector.broadcast %15 : vector<1x8xf32> to vector<16x8xf32>
    %17 = arith.addf %14, %16 : vector<16x8xf32>
    %cst_18 = arith.constant 0.000000e+00 : f32
    %18 = vector.broadcast %cst_18 : f32 to vector<1x8xf32>
    %c0_19 = arith.constant 0 : index
    %c0_20 = arith.constant 0 : index
    %19 = vector.load %arg9[%c0_19, %c0_20] : memref<18x8xf32, #tpu.memory_space<vmem>>, vector<1x8xf32>
    tpu.vector_store %arg9[%c0_19, %c0_20], %18 {strides = array<i32>} : memref<18x8xf32, #tpu.memory_space<vmem>>, vector<1x8xf32>,
    %cst_21 = arith.constant 0.000000e+00 : f32
    %20 = vector.broadcast %cst_21 : f32 to vector<1x8xf32>
    %c17 = arith.constant 17 : index
    %c0_22 = arith.constant 0 : index
    %21 = vector.load %arg9[%c17, %c0_22] : memref<18x8xf32, #tpu.memory_space<vmem>>, vector<1x8xf32>
    tpu.vector_store %arg9[%c17, %c0_22], %20 {strides = array<i32>} : memref<18x8xf32, #tpu.memory_space<vmem>>, vector<1x8xf32>,
    %c1_23 = arith.constant 1 : index
    %c0_24 = arith.constant 0 : index
    %22 = vector.load %arg9[%c1_23, %c0_24] : memref<18x8xf32, #tpu.memory_space<vmem>>, vector<16x8xf32>
    tpu.vector_store %arg9[%c1_23, %c0_24], %17 {strides = array<i32>} : memref<18x8xf32, #tpu.memory_space<vmem>>, vector<16x8xf32>,
    %c0_25 = arith.constant 0 : index
    %c0_26 = arith.constant 0 : index
    %23 = tpu.strided_load %arg9[%c0_25, %c0_26] {strides = array<i32: 2, 1>} : memref<18x8xf32, #tpu.memory_space<vmem>>, vector<8x8xf32>
    %c1_27 = arith.constant 1 : index
    %c0_28 = arith.constant 0 : index
    %24 = tpu.strided_load %arg9[%c1_27, %c0_28] {strides = array<i32: 2, 1>} : memref<18x8xf32, #tpu.memory_space<vmem>>, vector<8x8xf32>
    %c2_29 = arith.constant 2 : index
    %c0_30 = arith.constant 0 : index
    %25 = tpu.strided_load %arg9[%c2_29, %c0_30] {strides = array<i32: 2, 1>} : memref<18x8xf32, #tpu.memory_space<vmem>>, vector<8x8xf32>
    %c3_31 = arith.constant 3 : index
    %c0_32 = arith.constant 0 : index
    %26 = tpu.strided_load %arg9[%c3_31, %c0_32] {strides = array<i32: 2, 1>} : memref<18x8xf32, #tpu.memory_space<vmem>>, vector<8x8xf32>
    %27 = tpu.concatenate %23, %24, %25, %26 in 1 : vector<8x8xf32>, vector<8x8xf32>, vector<8x8xf32>, vector<8x8xf32> -> vector<8x32xf32>
    %28 = arith.truncf %27 : vector<8x32xf32> to vector<8x32xbf16>
    %c0_33 = arith.constant 0 : index
    %c0_34 = arith.constant 0 : index
    %29 = vector.load %arg5[%c0_33, %c0_34] : memref<16x32xbf16, #tpu.memory_space<vmem>>, vector<16x32xbf16>
    %cst_35 = arith.constant dense<0.000000e+00> : vector<16x8xf32>
    %30 = tpu.matmul %29, %28, %cst_35 {dimension_numbers = #tpu.dot_dimension_numbers<[1], [1], [0], [0], [0, 0, 1, 0], [], []>} : vector<16x32xbf16>, vector<8x32xbf16>, vector<16x8xf32> -> vector<16x8xf32>
    %c0_36 = arith.constant 0 : index
    %c0_37 = arith.constant 0 : index
    %31 = vector.load %arg6[%c0_36, %c0_37] : memref<16x1xf32, #tpu.memory_space<vmem>>, vector<16x1xf32>
    %32 = vector.broadcast %31 : vector<16x1xf32> to vector<16x8xf32>
    %33 = arith.addf %30, %32 : vector<16x8xf32>
    %c0_38 = arith.constant 0 : index
    %c0_39 = arith.constant 0 : index
    %c0_40 = arith.constant 0 : index
    %34 = vector.load %arg7[%c0_38, %c0_39, %c0_40] : memref<1x20x8xf32, #tpu.memory_space<vmem>>, vector<1x16x8xf32>
    %35 = vector.shape_cast %34 : vector<1x16x8xf32> to vector<16x8xf32>
    %36 = vector.shape_cast %33 : vector<16x8xf32> to vector<1x16x8xf32>
    tpu.vector_store %arg7[%c0_38, %c0_39, %c0_40], %36 {strides = array<i32>} : memref<1x20x8xf32, #tpu.memory_space<vmem>>, vector<1x16x8xf32>,
    %c0_41 = arith.constant 0 : index
    %c0_42 = arith.constant 0 : index
    %c0_43 = arith.constant 0 : index
    %37 = vector.load %arg2[%c0_41, %c0_42, %c0_43] : memref<1x4x8xf32, #tpu.memory_space<vmem>>, vector<1x4x8xf32>
    %38 = vector.shape_cast %37 : vector<1x4x8xf32> to vector<4x8xf32>
    %c0_44 = arith.constant 0 : index
    %c16 = arith.constant 16 : index
    %c0_45 = arith.constant 0 : index
    %39 = vector.load %arg7[%c0_44, %c16, %c0_45] : memref<1x20x8xf32, #tpu.memory_space<vmem>>, vector<1x4x8xf32>
    %40 = vector.shape_cast %39 : vector<1x4x8xf32> to vector<4x8xf32>
    %41 = vector.shape_cast %38 : vector<4x8xf32> to vector<1x4x8xf32>
    tpu.vector_store %arg7[%c0_44, %c16, %c0_45], %41 {strides = array<i32>} : memref<1x20x8xf32, #tpu.memory_space<vmem>>, vector<1x4x8xf32>,
    return
  }
  func.func @transform_0(%arg0: i32) -> (i32, i32, i32) {
    %c0_i32 = arith.constant 0 : i32
    %c0_i32_0 = arith.constant 0 : i32
    %c0_i32_1 = arith.constant 0 : i32
    return %arg0, %c0_i32, %c0_i32_0 : i32, i32, i32
  }
  func.func @transform_1(%arg0: i32) -> (i32, i32, i32) {
    %c0_i32 = arith.constant 0 : i32
    %c0_i32_0 = arith.constant 0 : i32
    %c0_i32_1 = arith.constant 0 : i32
    return %arg0, %c0_i32, %c0_i32_0 : i32, i32, i32
  }
  func.func @transform_2(%arg0: i32) -> (i32, i32) {
    %c0_i32 = arith.constant 0 : i32
    %c0_i32_0 = arith.constant 0 : i32
    %c0_i32_1 = arith.constant 0 : i32
    return %c0_i32, %c0_i32_0 : i32, i32
  }
  func.func @transform_3(%arg0: i32) -> (i32, i32) {
    %c0_i32 = arith.constant 0 : i32
    %c0_i32_0 = arith.constant 0 : i32
    %c0_i32_1 = arith.constant 0 : i32
    return %c0_i32, %c0_i32_0 : i32, i32
  }
  func.func @transform_4(%arg0: i32) -> (i32, i32) {
    %c0_i32 = arith.constant 0 : i32
    %c0_i32_0 = arith.constant 0 : i32
    %c0_i32_1 = arith.constant 0 : i32
    return %c0_i32, %c0_i32_0 : i32, i32
  }
  func.func @transform_5(%arg0: i32) -> (i32, i32) {
    %c0_i32 = arith.constant 0 : i32
    %c0_i32_0 = arith.constant 0 : i32
    %c0_i32_1 = arith.constant 0 : i32
    return %c0_i32, %c0_i32_0 : i32, i32
  }
  func.func @transform_6(%arg0: i32) -> (i32, i32, i32) {
    %c0_i32 = arith.constant 0 : i32
    %c0_i32_0 = arith.constant 0 : i32
    %c0_i32_1 = arith.constant 0 : i32
    return %arg0, %c0_i32, %c0_i32_0 : i32, i32, i32
  }
}

</mosaic_0001>

<llo_original>
// kernel: _concat_model_forward.1
$region0: #{_concat_model_forward.1}
  #allocation0 [shape = 'u32[]', space=smem, size = 0x4, offset = 0x4, fixed_abs, tag = 'smem constant byte address 0x4 - core index']
  #allocation1 [shape = 'u32[144,128]{1,0:T(1,128)}', space=vmem, size = 0x12000, scoped, tag = 'internal scratch']
  #allocation2 [shape = 'f32[34,4]{1,0:T(8,128)}', space=vmem, size = 0x5000, scoped, tag = 'scratch operand']
  #allocation3 [shape = 'f32[18,8]{1,0:T(8,128)}', space=vmem, size = 0x3000, scoped, tag = 'scratch operand']
  %s0 = inlined_call_operand.vmem [shape: f32[2,32,4], index: 0, kind: input, shape index: {}]
  %s1 = inlined_call_operand.vmem [shape: f32[2,4,8], index: 1, kind: input, shape index: {}]
  %s2 = inlined_call_operand.vmem [shape: bf16[16,8], index: 2, kind: input, shape index: {}]
  %s3 = inlined_call_operand.vmem [shape: f32[1,8], index: 3, kind: input, shape index: {}]
  %s4 = inlined_call_operand.vmem [shape: bf16[16,32], index: 4, kind: input, shape index: {}]
  %s5 = inlined_call_operand.vmem [shape: f32[16,1], index: 5, kind: input, shape index: {}]
  %s6 = inlined_call_operand.vmem [shape: f32[2,20,8], index: 6, kind: output, shape index: {}]
  %s7 = sld [smem:[#allocation0]]
  $region57: #{_concat_model_forward.1} parent=0
    _
  %s9 = ssub.s32 1, %s7
  %s10 = scalar_select 0, %s9, %s7
  loop: start=0, step=1, limit=4
  $region2: #{_concat_model_forward.1} parent=0 // loop_pre_header
    _
  $region3: #{_concat_model_forward.1} parent=0 // loop_header
    %s12 = sphi 0, %s16
    %p13 = scmp.ge.s32.totalorder %s12, 4
    %s22 = sphi 0, %s24
    %s25 = sphi 0, %s22
    %s26 = sphi 0, %s25
    %s42 = sphi 0, %s26
    %s48 = sphi 0, %s50
    %s51 = sphi 0, %s48
    %s52 = sphi 0, %s51
    %s68 = sphi 0, %s52
    %s72 = sphi 0, %s72
    %s74 = sphi 0, %s72
    %s75 = sphi 0, %s74
    %s89 = sphi 0, %s75
    %s93 = sphi 0, %s93
    %s95 = sphi 0, %s93
    %s96 = sphi 0, %s95
    %s110 = sphi 0, %s96
    %s114 = sphi 0, %s114
    %s116 = sphi 0, %s114
    %s117 = sphi 0, %s116
    %s131 = sphi 0, %s117
    %s135 = sphi 0, %s135
    %s137 = sphi 0, %s135
    %s138 = sphi 0, %s137
    %s152 = sphi 0, %s138
    %s158 = sphi 0, %s160
    %s161 = sphi 0, %s158
    %s162 = sphi 0, %s161
    %s178 = sphi 0, %s162
  $region4: #{_concat_model_forward.1} parent=0 // loop_header_branch
    %15 = sbr.rel (%p13) target = $region8
  $region5: #{_concat_model_forward.1} parent=0 // loop_body
    %s17 = ssub.s32 %s12, 1
    %s18 = ssub.s32 %s12, 2
    %s19 = sadd.s32 %s12, 1
    %s20 = ssub.s32 %s12, %s19
    %p21 = scmp.eq.s32.totalorder %s20, 0
    %s23 = sadd.s32 %s22, 1
    %s24 = scalar_select %p21, %s22, %s23
    %p27 = pneg %p21
    %p28 = scmp.eq.s32.totalorder %s12, 1
    %p29 = por %p27, %p28
    %p30 = scmp.ne.s32.totalorder %s22, %s25
    %p31 = scmp.eq.s32.totalorder %s12, 0
    %p32 = por %p30, %p31
    %p33 = scmp.ne.s32.totalorder %s22, %s25
    %p34 = scmp.eq.s32.totalorder %s17, 1
    %p35 = por %p33, %p34
    %p36 = scmp.ne.s32.totalorder %s25, %s26
    %p37 = scmp.eq.s32.totalorder %s17, 0
    %p38 = por %p36, %p37
    %p39 = scmp.ne.s32.totalorder %s25, %s26
    %p40 = scmp.eq.s32.totalorder %s18, 1
    %p41 = por %p39, %p40
    %p43 = scmp.ne.s32.totalorder %s26, %s42
    %p44 = scmp.eq.s32.totalorder %s18, 0
    %p45 = por %p43, %p44
    %s46 = ssub.s32 %s12, %s19
    %p47 = scmp.eq.s32.totalorder %s46, 0
    %s49 = sadd.s32 %s48, 1
    %s50 = scalar_select %p47, %s48, %s49
    %p53 = pneg %p47
    %p54 = scmp.eq.s32.totalorder %s12, 1
    %p55 = por %p53, %p54
    %p56 = scmp.ne.s32.totalorder %s48, %s51
    %p57 = scmp.eq.s32.totalorder %s12, 0
    %p58 = por %p56, %p57
    %p59 = scmp.ne.s32.totalorder %s48, %s51
    %p60 = scmp.eq.s32.totalorder %s17, 1
    %p61 = por %p59, %p60
    %p62 = scmp.ne.s32.totalorder %s51, %s52
    %p63 = scmp.eq.s32.totalorder %s17, 0
    %p64 = por %p62, %p63
    %p65 = scmp.ne.s32.totalorder %s51, %s52
    %p66 = scmp.eq.s32.totalorder %s18, 1
    %p67 = por %p65, %p66
    %p69 = scmp.ne.s32.totalorder %s52, %s68
    %p70 = scmp.eq.s32.totalorder %s18, 0
    %p71 = por %p69, %p70
    %s73 = sadd.s32 %s72, 1
    %p76 = scmp.eq.s32.totalorder %s12, 1
    %p77 = scmp.ne.s32.totalorder %s72, %s74
    %p78 = scmp.eq.s32.totalorder %s12, 0
    %p79 = por %p77, %p78
    %p80 = scmp.ne.s32.totalorder %s72, %s74
    %p81 = scmp.eq.s32.totalorder %s17, 1
    %p82 = por %p80, %p81
    %p83 = scmp.ne.s32.totalorder %s74, %s75
    %p84 = scmp.eq.s32.totalorder %s17, 0
    %p85 = por %p83, %p84
    %p86 = scmp.ne.s32.totalorder %s74, %s75
    %p87 = scmp.eq.s32.totalorder %s18, 1
    %p88 = por %p86, %p87
    %p90 = scmp.ne.s32.totalorder %s75, %s89
    %p91 = scmp.eq.s32.totalorder %s18, 0
    %p92 = por %p90, %p91
    %s94 = sadd.s32 %s93, 1
    %p97 = scmp.eq.s32.totalorder %s12, 1
    %p98 = scmp.ne.s32.totalorder %s93, %s95
    %p99 = scmp.eq.s32.totalorder %s12, 0
    %p100 = por %p98, %p99
    %p101 = scmp.ne.s32.totalorder %s93, %s95
    %p102 = scmp.eq.s32.totalorder %s17, 1
    %p103 = por %p101, %p102
    %p104 = scmp.ne.s32.totalorder %s95, %s96
    %p105 = scmp.eq.s32.totalorder %s17, 0
    %p106 = por %p104, %p105
    %p107 = scmp.ne.s32.totalorder %s95, %s96
    %p108 = scmp.eq.s32.totalorder %s18, 1
    %p109 = por %p107, %p108
    %p111 = scmp.ne.s32.totalorder %s96, %s110
    %p112 = scmp.eq.s32.totalorder %s18, 0
    %p113 = por %p111, %p112
    %s115 = sadd.s32 %s114, 1
    %p118 = scmp.eq.s32.totalorder %s12, 1
    %p119 = scmp.ne.s32.totalorder %s114, %s116
    %p120 = scmp.eq.s32.totalorder %s12, 0
    %p121 = por %p119, %p120
    %p122 = scmp.ne.s32.totalorder %s114, %s116
    %p123 = scmp.eq.s32.totalorder %s17, 1
    %p124 = por %p122, %p123
    %p125 = scmp.ne.s32.totalorder %s116, %s117
    %p126 = scmp.eq.s32.totalorder %s17, 0
    %p127 = por %p125, %p126
    %p128 = scmp.ne.s32.totalorder %s116, %s117
    %p129 = scmp.eq.s32.totalorder %s18, 1
    %p130 = por %p128, %p129
    %p132 = scmp.ne.s32.totalorder %s117, %s131
    %p133 = scmp.eq.s32.totalorder %s18, 0
    %p134 = por %p132, %p133
    %s136 = sadd.s32 %s135, 1
    %p139 = scmp.eq.s32.totalorder %s12, 1
    %p140 = scmp.ne.s32.totalorder %s135, %s137
    %p141 = scmp.eq.s32.totalorder %s12, 0
    %p142 = por %p140, %p141
    %p143 = scmp.ne.s32.totalorder %s135, %s137
    %p144 = scmp.eq.s32.totalorder %s17, 1
    %p145 = por %p143, %p144
    %p146 = scmp.ne.s32.totalorder %s137, %s138
    %p147 = scmp.eq.s32.totalorder %s17, 0
    %p148 = por %p146, %p147
    %p149 = scmp.ne.s32.totalorder %s137, %s138
    %p150 = scmp.eq.s32.totalorder %s18, 1
    %p151 = por %p149, %p150
    %p153 = scmp.ne.s32.totalorder %s138, %s152
    %p154 = scmp.eq.s32.totalorder %s18, 0
    %p155 = por %p153, %p154
    %s156 = ssub.s32 %s12, %s19
    %p157 = scmp.eq.s32.totalorder %s156, 0
    %s159 = sadd.s32 %s158, 1
    %s160 = scalar_select %p157, %s158, %s159
    %p163 = pneg %p157
    %p164 = scmp.eq.s32.totalorder %s12, 1
    %p165 = por %p163, %p164
    %p166 = scmp.ne.s32.totalorder %s158, %s161
    %p167 = scmp.eq.s32.totalorder %s12, 0
    %p168 = por %p166, %p167
    %p169 = scmp.ne.s32.totalorder %s158, %s161
    %p170 = scmp.eq.s32.totalorder %s17, 1
    %p171 = por %p169, %p170
    %p172 = scmp.ne.s32.totalorder %s161, %s162
    %p173 = scmp.eq.s32.totalorder %s17, 0
    %p174 = por %p172, %p173
    %p175 = scmp.ne.s32.totalorder %s161, %s162
    %p176 = scmp.eq.s32.totalorder %s18, 1
    %p177 = por %p175, %p176
    %p179 = scmp.ne.s32.totalorder %s162, %s178
    %p180 = scmp.eq.s32.totalorder %s18, 0
    %p181 = por %p179, %p180
    %p182 = scmp.le.s32.totalorder 1, %s12
    %p183 = scmp.lt.s32.totalorder %s12, 3
    %p184 = pnand %p182, %p183
    %p185 = pneg %p184
    // Predicated region
    $region9: #{_concat_model_forward.1} parent=5 // pred_check
      _
    $region10: #{_concat_model_forward.1} parent=5 // pred_check_branch
      %187 = sbr.rel (%p184) target = $region12
    $region11: #{_concat_model_forward.1} parent=5 // pred_region
      %s188 = ssub.s32 %s12, 1
      // Predicated region
      $region13: #{_concat_model_forward.1} parent=11 // pred_check
        %p189 = pneg %p85
      $region14: #{_concat_model_forward.1} parent=11 // pred_check_branch
        %191 = sbr.rel (%p189) target = $region16
      $region15: #{_concat_model_forward.1} parent=11 // pred_region
        _
      $region16: #{_concat_model_forward.1} parent=11 // pred_fallthru
        _
      // Predicated region
      $region17: #{_concat_model_forward.1} parent=11 // pred_check
        %p192 = pneg %p106
      $region18: #{_concat_model_forward.1} parent=11 // pred_check_branch
        %194 = sbr.rel (%p192) target = $region20
      $region19: #{_concat_model_forward.1} parent=11 // pred_region
        _
      $region20: #{_concat_model_forward.1} parent=11 // pred_fallthru
        _
      // Predicated region
      $region21: #{_concat_model_forward.1} parent=11 // pred_check
        %p195 = pneg %p127
      $region22: #{_concat_model_forward.1} parent=11 // pred_check_branch
        %197 = sbr.rel (%p195) target = $region24
      $region23: #{_concat_model_forward.1} parent=11 // pred_region
        _
      $region24: #{_concat_model_forward.1} parent=11 // pred_fallthru
        _
      // Predicated region
      $region25: #{_concat_model_forward.1} parent=11 // pred_check
        %p198 = pneg %p148
      $region26: #{_concat_model_forward.1} parent=11 // pred_check_branch
        %200 = sbr.rel (%p198) target = $region28
      $region27: #{_concat_model_forward.1} parent=11 // pred_region
        _
      $region28: #{_concat_model_forward.1} parent=11 // pred_fallthru
        _
    $region12: #{_concat_model_forward.1} parent=5 // pred_fallthru
      _
    %p201 = scmp.lt.s32.totalorder %s12, 2
    // Predicated region
    $region29: #{_concat_model_forward.1} parent=5 // pred_check
      %p202 = pneg %p201
    $region30: #{_concat_model_forward.1} parent=5 // pred_check_branch
      %204 = sbr.rel (%p202) target = $region32
    $region31: #{_concat_model_forward.1} parent=5 // pred_region
      // Predicated region
      $region33: #{_concat_model_forward.1} parent=31 // pred_check
        %p205 = pneg %p32
      $region34: #{_concat_model_forward.1} parent=31 // pred_check_branch
        %207 = sbr.rel (%p205) target = $region36
      $region35: #{_concat_model_forward.1} parent=31 // pred_region
        %p208 = scmp.lt.s32.totalorder %s12, 1
        %s209 = scalar_select %p208, %s12, 1
        %s210 = smul.addr %s209, 4
        %s211 = smul.addr %s210, 8
        %s212 = scalar_lea.vmem %s0, %s211
      $region36: #{_concat_model_forward.1} parent=31 // pred_fallthru
        _
      // Predicated region
      $region37: #{_concat_model_forward.1} parent=31 // pred_check
        %p213 = pneg %p58
      $region38: #{_concat_model_forward.1} parent=31 // pred_check_branch
        %215 = sbr.rel (%p213) target = $region40
      $region39: #{_concat_model_forward.1} parent=31 // pred_region
        %p216 = scmp.lt.s32.totalorder %s12, 1
        %s217 = scalar_select %p216, %s12, 1
        %s218 = smul.addr %s217, 4
        %s219 = scalar_lea.vmem %s1, %s218
      $region40: #{_concat_model_forward.1} parent=31 // pred_fallthru
        _
    $region32: #{_concat_model_forward.1} parent=5 // pred_fallthru
      _
    %p220 = scmp.le.s32.totalorder 1, %s12
    %p221 = scmp.lt.s32.totalorder %s12, 3
    %p222 = pnand %p220, %p221
    %p223 = pneg %p222
    // Predicated region
    $region41: #{_concat_model_forward.1} parent=5 // pred_check
      _
    $region42: #{_concat_model_forward.1} parent=5 // pred_check_branch
      %225 = sbr.rel (%p222) target = $region44
    $region43: #{_concat_model_forward.1} parent=5 // pred_region
      %s226 = ssub.s32 %s12, 1
      %p227 = scmp.lt.s32.totalorder %s17, 1
      %s228 = scalar_select %p227, %s17, 1
      %s229 = smul.addr %s228, 4
      %s230 = smul.addr %s229, 8
      %s231 = scalar_lea.vmem %s0, %s230
      %p232 = pneg %p38
      %p233 = pneg %p35
      %p234 = scmp.lt.s32.totalorder %s17, 1
      %s235 = scalar_select %p234, %s17, 1
      %s236 = smul.addr %s235, 4
      %s237 = scalar_lea.vmem %s1, %s236
      %p238 = pneg %p64
      %p239 = pneg %p61
      %p240 = pneg %p85
      %p241 = pneg %p82
      %p242 = pneg %p106
      %p243 = pneg %p103
      %p244 = pneg %p127
      %p245 = pneg %p124
      %p246 = pneg %p148
      %p247 = pneg %p145
      %p248 = pneg %p174
      %p249 = pneg %p171
      %p250 = scmp.lt.s32.totalorder %s17, 1
      %s251 = scalar_select %p250, %s17, 1
      %s252 = smul.addr %s251, 3
      %s253 = smul.addr %s252, 8
      %s254 = scalar_lea.vmem %s6, %s253
      %p255 = scmp.lt.s32.totalorder %s17, 1
      %s256 = scalar_select %p255, %s17, 1
      %s257 = smul.addr %s256, 4
      %s258 = smul.addr %s257, 8
      %s259 = scalar_lea.vmem %s0, %s258
      %p260 = scmp.lt.s32.totalorder %s17, 1
      %s261 = scalar_select %p260, %s17, 1
      %s262 = smul.addr %s261, 4
      %s263 = scalar_lea.vmem %s1, %s262
      %p264 = scmp.lt.s32.totalorder %s17, 1
      %s265 = scalar_select %p264, %s17, 1
      %s266 = smul.addr %s265, 3
      %s267 = smul.addr %s266, 8
      %s268 = scalar_lea.vmem %s6, %s267
      %vm270 = vcmask 24576
      %271 = vst.msk [vmem:[#allocation2] sm:$0x1] %vm270, 0.0
      %272 = vst.msk [vmem:[#allocation2 + $0x21] sm:$0x1] %vm270, 0.0
      %v273 = vld [vmem:[%s259] sm:$0xff]
      %v274 = vld [vmem:[%s259 + $0x8] sm:$0xff]
      %v275 = vld [vmem:[%s259 + $0x10] sm:$0xff]
      %v276 = vld [vmem:[%s259 + $0x18] sm:$0xff]
      %vm277 = vcmask 31744
      %278 = vst.msk [vmem:[#allocation2 + $0x1] sm:$0xff] %vm277, %v273
      %279 = vst.msk [vmem:[#allocation2 + $0x9] sm:$0xff] %vm277, %v274
      %280 = vst.msk [vmem:[#allocation2 + $0x11] sm:$0xff] %vm277, %v275
      %281 = vst.msk [vmem:[#allocation2 + $0x19] sm:$0xff] %vm277, %v276
      %v282 = vld [vmem:[#allocation2] ss:$2 sm:$0xff]
      %s283 = scalar_lea.vmem [#allocation2], 16
      %v284 = vld [vmem:[%s283] ss:$2 sm:$0xff]
      %s285 = scalar_lea.vmem [#allocation2], 1
      %v286 = vld [vmem:[%s285] ss:$2 sm:$0xff]
      %s287 = scalar_lea.vmem [#allocation2], 17
      %v288 = vld [vmem:[%s287] ss:$2 sm:$0xff]
      %s289 = scalar_lea.vmem [#allocation2], 2
      %v290 = vld [vmem:[%s289] ss:$2 sm:$0xff]
      %s291 = scalar_lea.vmem [#allocation2], 18
      %v292 = vld [vmem:[%s291] ss:$2 sm:$0xff]
      %s293 = scalar_lea.vmem [#allocation2], 3
      %v294 = vld [vmem:[%s293] ss:$2 sm:$0xff]
      %s295 = scalar_lea.vmem [#allocation2], 19
      %v296 = vld [vmem:[%s295] ss:$2 sm:$0xff]
      %299 = vrot.lane.b32.xlu0 %v286, 4
      %v300 = vpop.permute.xlu0 %299
      %301 = vrot.lane.b32.xlu0 %v288, 4
      %v302 = vpop.permute.xlu0 %301
      %307 = vrot.lane.b32.xlu0 %v290, 8
      %v308 = vpop.permute.xlu0 %307
      %309 = vrot.lane.b32.xlu0 %v292, 8
      %v310 = vpop.permute.xlu0 %309
      %315 = vrot.lane.b32.xlu0 %v294, 12
      %v316 = vpop.permute.xlu0 %315
      %317 = vrot.lane.b32.xlu0 %v296, 12
      %v318 = vpop.permute.xlu0 %317
      %v321 = vsel %vm277, %v282, %v300
      %v322 = vsel %vm277, %v284, %v302
      %vm323 = vcmask 64512
      %v324 = vsel %vm323, %v321, %v308
      %v325 = vsel %vm323, %v322, %v310
      %vm326 = vcmask 97280
      %v327 = vsel %vm326, %v324, %v316
      %v328 = vsel %vm326, %v325, %v318
      %v329 = vpack.c.bf16 %v328, %v327
      %v330 = vld [vmem:[%s2] sm:$0xf]
      %v331 = vld [vmem:[%s2 + $0x4] sm:$0xf]
      %v332 = vld [vmem:[%s3] sm:$0x1]
      %v334 = vlaneseq
      %v335 = vshrl.u32 %v334, 7
      %v336 = vsub.s32 0, %v335
      %v337 = vrot.slane %v332, %v336
      %v341 = vunpack.c.l.b16 %v330
      %v342 = vunpack.c.l.b16 %v331
      %v343 = vpack.c.b16 %v342, %v341
      %vm345 = vcmask 130048
      %v347 = vsel %vm345, %v329, 0
      %349 = vmatprep.subr.bf16.mxu0 0
      %350 = vmatpush1.bf16.msra.mxu0 %v343
      %351 = vmatprep.subr.bf16.mxu0 0
      %352 = vmatpush1.bf16.msra.mxu0 0
      %353 = vmatprep.subr.bf16.mxu0 0
      %354 = vmatpush1.bf16.msra.mxu0 0
      %355 = vmatprep.subr.bf16.mxu0 0
      %356 = vmatpush1.bf16.msra.mxu0 0
      %357 = vmatprep.subr.bf16.mxu0 0
      %358 = vmatpush1.bf16.msra.mxu0 0
      %359 = vmatprep.subr.bf16.mxu0 0
      %360 = vmatpush1.bf16.msra.mxu0 0
      %361 = vmatprep.subr.bf16.mxu0 0
      %362 = vmatpush1.bf16.msra.mxu0 0
      %363 = vmatprep.subr.bf16.mxu0 0
      %364 = vmatpush1.bf16.msra.mxu0 0
      %365 = vmatprep.subr.bf16.mxu0 0
      %366 = vmatpush1.bf16.msra.mxu0 0
      %367 = vmatprep.subr.bf16.mxu0 0
      %368 = vmatpush1.bf16.msra.mxu0 0
      %369 = vmatprep.subr.bf16.mxu0 0
      %370 = vmatpush1.bf16.msra.mxu0 0
      %371 = vmatprep.subr.bf16.mxu0 0
      %372 = vmatpush1.bf16.msra.mxu0 0
      %373 = vmatprep.subr.bf16.mxu0 0
      %374 = vmatpush1.bf16.msra.mxu0 0
      %375 = vmatprep.subr.bf16.mxu0 0
      %376 = vmatpush1.bf16.msra.mxu0 0
      %377 = vmatprep.subr.bf16.mxu0 0
      %378 = vmatpush1.bf16.msra.mxu0 0
      %379 = vmatprep.subr.bf16.mxu0 0
      %380 = vmatpush1.bf16.msra.mxu0 0
      %381 = vmatprep.mubr.bf16.mxu0 0
      %382 = vmatmul.mubr.bf16.gmra.mrb[0].mxu0 %v347
      %v383 = vpop.f32.mrb[0].mxu0
      %v384 = vadd.f32 %v337, %v383
      %v385 = vpop.f32.mrb[0].mxu0
      %v386 = vpop.f32.mrb[0].mxu0
      %v387 = vadd.f32 %v337, %v386
      %v388 = vpop.f32.mrb[0].mxu0
      %389 = vdwg.mxu0
      %vm390 = vcmask 57344
      %391 = vst.msk [vmem:[#allocation3] sm:$0x1] %vm390, 0.0
      %392 = vst.msk [vmem:[#allocation3 + $0x11] sm:$0x1] %vm390, 0.0
      %393 = vst.msk [vmem:[#allocation3 + $0x1] sm:$0xff] %vm323, %v384
      %394 = vst.msk [vmem:[#allocation3 + $0x9] sm:$0xff] %vm323, %v387
      %v395 = vld [vmem:[#allocation3] ss:$2 sm:$0xff]
      %s396 = scalar_lea.vmem [#allocation3], 1
      %v397 = vld [vmem:[%s396] ss:$2 sm:$0xff]
      %s398 = scalar_lea.vmem [#allocation3], 2
      %v399 = vld [vmem:[%s398] ss:$2 sm:$0xff]
      %s400 = scalar_lea.vmem [#allocation3], 3
      %v401 = vld [vmem:[%s400] ss:$2 sm:$0xff]
      %403 = vrot.lane.b32.xlu0 %v397, 8
      %v404 = vpop.permute.xlu0 %403
      %407 = vrot.lane.b32.xlu0 %v399, 16
      %v408 = vpop.permute.xlu0 %407
      %411 = vrot.lane.b32.xlu0 %v401, 24
      %v412 = vpop.permute.xlu0 %411
      %v414 = vsel %vm323, %v395, %v404
      %v415 = vsel %vm345, %v414, %v408
      %vm416 = vcmask 195584
      %v417 = vsel %vm416, %v415, %v412
      %v418 = vpack.c.bf16 %v417, %v417
      %v419 = vld [vmem:[%s4] sm:$0xf]
      %v420 = vld [vmem:[%s4 + $0x4] sm:$0xf]
      %v421 = vld [vmem:[%s5] sm:$0xff]
      %v422 = vld [vmem:[%s5 + $0x8] sm:$0xff]
      %424 = vset.pattern.permute.xlu0 0
      %425 = vperm.xlu0 %424, %v421
      %v426 = vpop.permute.xlu0 %425
      %429 = vset.pattern.permute.xlu0 0
      %430 = vperm.xlu0 %429, %v422
      %v431 = vpop.permute.xlu0 %430
      %v435 = vunpack.c.l.b16 %v419
      %v436 = vunpack.c.l.b16 %v420
      %v437 = vpack.c.b16 %v436, %v435
      %vm438 = vcmask 261120
      %v440 = vsel %vm438, %v437, 0
      %v443 = vsel %vm438, %v418, 0
      %445 = vmatprep.subr.bf16.mxu0 0
      %446 = vmatpush1.bf16.xpose.msra.mxu0 %v443
      %447 = vmatprep.subr.bf16.mxu0 0
      %448 = vmatpush1.bf16.xpose.msra.mxu0 0
      %449 = vmatprep.subr.bf16.mxu0 0
      %450 = vmatpush1.bf16.xpose.msra.mxu0 0
      %451 = vmatprep.subr.bf16.mxu0 0
      %452 = vmatpush1.bf16.xpose.msra.mxu0 0
      %453 = vmatprep.subr.bf16.mxu0 0
      %454 = vmatpush1.bf16.xpose.msra.mxu0 0
      %455 = vmatprep.subr.bf16.mxu0 0
      %456 = vmatpush1.bf16.xpose.msra.mxu0 0
      %457 = vmatprep.subr.bf16.mxu0 0
      %458 = vmatpush1.bf16.xpose.msra.mxu0 0
      %459 = vmatprep.subr.bf16.mxu0 0
      %460 = vmatpush1.bf16.xpose.msra.mxu0 0
      %461 = vmatprep.subr.bf16.mxu0 0
      %462 = vmatpush1.bf16.xpose.msra.mxu0 0
      %463 = vmatprep.subr.bf16.mxu0 0
      %464 = vmatpush1.bf16.xpose.msra.mxu0 0
      %465 = vmatprep.subr.bf16.mxu0 0
      %466 = vmatpush1.bf16.xpose.msra.mxu0 0
      %467 = vmatprep.subr.bf16.mxu0 0
      %468 = vmatpush1.bf16.xpose.msra.mxu0 0
      %469 = vmatprep.subr.bf16.mxu0 0
      %470 = vmatpush1.bf16.xpose.msra.mxu0 0
      %471 = vmatprep.subr.bf16.mxu0 0
      %472 = vmatpush1.bf16.xpose.msra.mxu0 0
      %473 = vmatprep.subr.bf16.mxu0 0
      %474 = vmatpush1.bf16.xpose.msra.mxu0 0
      %475 = vmatprep.subr.bf16.mxu0 0
      %476 = vmatpush1.bf16.xpose.msra.mxu0 0
      %477 = vmatprep.mubr.bf16.mxu0 0
      %478 = vmatmul.mubr.bf16.gmra.mrb[0].mxu0 %v440
      %v479 = vpop.f32.mrb[0].mxu0
      %v480 = vadd.f32 %v426, %v479
      %v481 = vpop.f32.mrb[0].mxu0
      %v482 = vpop.f32.mrb[0].mxu0
      %v483 = vadd.f32 %v431, %v482
      %v484 = vpop.f32.mrb[0].mxu0
      %485 = vdwg.mxu0
      %486 = vst.msk [vmem:[%s268] sm:$0xff] %vm323, %v480
      %487 = vst.msk [vmem:[%s268 + $0x8] sm:$0xff] %vm323, %v483
      %v488 = vld [vmem:[%s263] sm:$0xf]
      %vm489 = vcmask 60416
      %490 = vst.msk [vmem:[%s268 + $0x10] sm:$0xf] %vm489, %v488
      %p491 = scmp.lt.s32.totalorder %s17, 1
      %s492 = scalar_select %p491, %s17, 1
      %s493 = smul.addr %s492, 3
      %s494 = smul.addr %s493, 8
      %s495 = scalar_lea.vmem %s6, %s494
      // Predicated region
      $region45: #{_concat_model_forward.1} parent=43 // pred_check
        %p496 = pneg %p171
      $region46: #{_concat_model_forward.1} parent=43 // pred_check_branch
        %498 = sbr.rel (%p496) target = $region48
      $region47: #{_concat_model_forward.1} parent=43 // pred_region
        _
      $region48: #{_concat_model_forward.1} parent=43 // pred_fallthru
        _
    $region44: #{_concat_model_forward.1} parent=5 // pred_fallthru
      _
    %p499 = scmp.le.s32.totalorder 2, %s12
    // Predicated region
    $region49: #{_concat_model_forward.1} parent=5 // pred_check
      %p500 = pneg %p499
    $region50: #{_concat_model_forward.1} parent=5 // pred_check_branch
      %502 = sbr.rel (%p500) target = $region52
    $region51: #{_concat_model_forward.1} parent=5 // pred_region
      %s503 = ssub.s32 %s12, 2
      // Predicated region
      $region53: #{_concat_model_forward.1} parent=51 // pred_check
        %p504 = pneg %p177
      $region54: #{_concat_model_forward.1} parent=51 // pred_check_branch
        %506 = sbr.rel (%p504) target = $region56
      $region55: #{_concat_model_forward.1} parent=51 // pred_region
        %p507 = scmp.lt.s32.totalorder %s18, 1
        %s508 = scalar_select %p507, %s18, 1
        %s509 = smul.addr %s508, 3
        %s510 = smul.addr %s509, 8
        %s511 = scalar_lea.vmem %s6, %s510
      $region56: #{_concat_model_forward.1} parent=51 // pred_fallthru
        _
    $region52: #{_concat_model_forward.1} parent=5 // pred_fallthru
      _
  $region6: #{_concat_model_forward.1} parent=0 // loop_footer
    %s16 = sadd.s32 1, %s12
  $region7: #{_concat_model_forward.1} parent=0 // loop_footer_branch
    %11 = sbr.rel target = $region3
  $region8: #{_concat_model_forward.1} parent=0 // loop_exit
    _

</llo_original>
